<compile_context>
chip_gen: v6e
topology: v6e:2x2x1
jax: 0.10.0
libtpu: 0.0.40
codegen_flags: <defaults>
</compile_context>

<pallas_src>
import functools

import jax
import jax.numpy as jnp
from jax.experimental import pallas as pl
from jax.experimental.pallas import tpu as pltpu


def _ce_nll_kernel(logits_ref, tgt_ref, nll_ref, m_sc, s_sc, t_sc, *,
                   block_c, num_classes, mask_cols):
    """Per-row cross-entropy NLL for one row tile, streamed over class tiles."""
    c = pl.program_id(1)
    nc = pl.num_programs(1)

    @pl.when(c == 0)
    def _init():
        m_sc[...] = jnp.full_like(m_sc, -jnp.inf)   # running max       (f32)
        s_sc[...] = jnp.zeros_like(s_sc)            # running exp-sum   (f32)
        t_sc[...] = jnp.zeros_like(t_sc)            # target logit      (f32)

    x = logits_ref[...]                      # (TM, TC), kept in input dtype
    # Local lane iota; shift the per-row target instead of offsetting the iota
    # (saves a full-tile int add per element).
    local_col = jax.lax.broadcasted_iota(jnp.int32, x.shape, 1)
    tgt_local = tgt_ref[...] - c * block_c   # (TM, 1) int32

    def update(x_tile, bound):
        if bound is not None:   # static: only compiled into the ragged branch
            x_tile = jnp.where(local_col < bound, x_tile,
                               jnp.asarray(-jnp.inf, dtype=x_tile.dtype))

        # ---- online logsumexp over the class (lane) axis --------------------
        m_prev = m_sc[...]
        m_new = jnp.maximum(
            m_prev, jnp.max(x_tile, axis=-1, keepdims=True).astype(jnp.float32))
        alpha = jnp.exp(m_prev - m_new)                       # (TM, 1) f32
        # subtract + exp in the input dtype (bf16 VPU/EUP on v6e/v7x); the lane
        # sum accumulates in f32.
        p = jnp.exp(x_tile - m_new.astype(x_tile.dtype))
        s_sc[...] = alpha * s_sc[...] + jnp.sum(p, axis=-1, keepdims=True,
                                                dtype=jnp.float32)
        m_sc[...] = m_new

        # ---- target-logit gather via iota == target mask ---------------------
        # At most one hit per row -> lane sum in the input dtype is exact.
        hit = local_col == tgt_local
        t_sc[...] += jnp.sum(jnp.where(hit, x_tile, jnp.zeros_like(x_tile)),
                             axis=-1, keepdims=True).astype(jnp.float32)

    if mask_cols:
        # Only the last class tile is ragged; keep the mask off the hot path.
        @pl.when(c == nc - 1)
        def _masked():
            update(x, num_classes - c * block_c)

        @pl.when(c != nc - 1)
        def _unmasked():
            update(x, None)
    else:
        update(x, None)

    # ---- finalize this row tile: NLL = logsumexp - target logit -------------
    @pl.when(c == nc - 1)
    def _finalize():
        nll_ref[...] = m_sc[...] + jnp.log(s_sc[...]) - t_sc[...]


def cross_entropy(output, target, *, block_n=512, block_c=None):
    """Mean cross-entropy loss matching F.cross_entropy(output, target).

    output: (N, C) float logits (f32 or bf16; streamed from HBM in native dtype)
    target: (N,)   int class indices
    """
    N, C = output.shape
    itemsize = jnp.dtype(output.dtype).itemsize

    # ---- tile sizing ---------------------------------------------------------
    # bf16 can stream twice the classes for the same HBM bytes per block.
    if block_c is None:
        block_c = 8192 if itemsize <= 2 else 4096

    # Row (sublane) tile: multiple of 8 unless it covers the whole batch.
    tm = min(block_n, N)
    if tm != N:
        tm = max(8, (tm // 8) * 8)
    # Give v7x's 2 TensorCores at least 2 row tiles to shard the "parallel" axis.
    if N >= 16 and pl.cdiv(N, tm) < 2:
        tm = ((pl.cdiv(N, 2) + 7) // 8) * 8

    # Class (lane) tile: multiple of 128 unless it covers all classes.
    tc = min(block_c, C)
    if tc != C:
        tc = max(128, (tc // 128) * 128)

    # ---- VMEM budget ---------------------------------------------------------
    # Double-buffered logits tiles dominate VMEM usage; everything else is tiny.
    try:
        phys_vmem = int(pltpu.get_tpu_info().vmem_capacity_bytes)
    except Exception:
        phys_vmem = 64 * 2**20        # conservative fallback: v7x per-TC VMEM
    vmem_cap = max(16 * 2**20, phys_vmem - 12 * 2**20)   # headroom for compiler

    def _budget(tm_, tc_):
        return 2 * tm_ * tc_ * itemsize + (4 << 20)

    # Auto-shrink oversized user-requested tiles so they always fit the cap.
    while _budget(tm, tc) > vmem_cap and tc > 128:
        tc = max(128, ((tc // 2) // 128) * 128)
    while _budget(tm, tc) > vmem_cap and tm > 8:
        tm = max(8, ((tm // 2) // 8) * 8)

    vmem_limit = int(min(vmem_cap, max(16 * 2**20, _budget(tm, tc))))

    grid = (pl.cdiv(N, tm), pl.cdiv(C, tc))
    mask_cols = (C % tc) != 0

    target2d = target.reshape(N, 1).astype(jnp.int32)

    kernel = functools.partial(_ce_nll_kernel, block_c=tc, num_classes=C,
                               mask_cols=mask_cols)

    nll = pl.pallas_call(
        kernel,
        out_shape=jax.ShapeDtypeStruct((N, 1), jnp.float32),
        grid_spec=pltpu.PrefetchScalarGridSpec(
            num_scalar_prefetch=0,
            grid=grid,
            in_specs=[
                pl.BlockSpec((tm, tc), lambda i, c: (i, c)),   # logits tile
                pl.BlockSpec((tm, 1), lambda i, c: (i, 0)),    # target column
            ],
            out_specs=pl.BlockSpec((tm, 1), lambda i, c: (i, 0)),
            scratch_shapes=[pltpu.VMEM((tm, 1), jnp.float32)] * 3,
        ),
        compiler_params=pltpu.CompilerParams(
            # Row tiles are independent -> "parallel" (v7x shards them over its
            # 2 TCs); the class axis carries the running-lse state -> last +
            # "arbitrary".
            dimension_semantics=("parallel", "arbitrary"),
            vmem_limit_bytes=vmem_limit,
        ),
        cost_estimate=pl.CostEstimate(
            flops=5 * N * C,
            transcendentals=N * C,
            bytes_accessed=N * C * itemsize + 3 * N * 4,
        ),
    )(output, target2d)

    # Mean over exactly N rows (Pallas drops padded rows of the ragged last row
    # tile on writeback, so no masking is needed here).
    return jnp.mean(nll)


if __name__ == "__main__":
    key = jax.random.PRNGKey(0)
    k_logits, k_tgt = jax.random.split(key)

    # Small but non-trivial: ragged in both the row tiles (20 % 8 != 0) and the
    # class tiles (320 % 128 != 0) to exercise the full tiled / online-lse /
    # masked-last-tile path.  For truly tiny problems plain XLA is preferable.
    N, C = 20, 320
    logits = jax.random.normal(k_logits, (N, C), dtype=jnp.float32)
    target = jax.random.randint(k_tgt, (N,), 0, C, dtype=jnp.int32)

    # Reference: F.cross_entropy semantics (mean NLL of log_softmax).
    log_probs = jax.nn.log_softmax(logits, axis=-1)
    ref = -jnp.mean(jnp.take_along_axis(log_probs, target[:, None], axis=-1))

    # Small explicit tiles: exercises multi-tile class streaming + ragged mask.
    loss = cross_entropy(logits, target, block_n=8, block_c=128)
    jax.block_until_ready(loss)
    assert jnp.allclose(loss, ref, atol=1e-4, rtol=1e-4), (loss, ref)

    # Default (large-tile) path: single class tile, 2 row tiles (v7x balance).
    loss_default = cross_entropy(logits, target)
    jax.block_until_ready(loss_default)
    assert jnp.allclose(loss_default, ref, atol=1e-4, rtol=1e-4), (loss_default, ref)

    # bf16 logits: streamed at half the HBM bytes, bf16 sub/exp, f32 accumulate.
    logits_bf16 = logits.astype(jnp.bfloat16)
    loss_bf16 = cross_entropy(logits_bf16, target, block_n=8, block_c=128)
    jax.block_until_ready(loss_bf16)
    log_probs_b = jax.nn.log_softmax(logits_bf16.astype(jnp.float32), axis=-1)
    ref_b = -jnp.mean(jnp.take_along_axis(log_probs_b, target[:, None], axis=-1))
    assert jnp.allclose(loss_bf16, ref_b, atol=5e-2, rtol=5e-2), (loss_bf16, ref_b)

    print("KERNEL_OK")
</pallas_src>

<mosaic_0001>
module attributes {stable_mosaic.version = 11 : i64} {
  func.func @_ce_nll_kernel(%arg0: i32, %arg1: i32, %arg2: memref<8x128xf32, #tpu.memory_space<vmem>>, %arg3: memref<8x1xi32, #tpu.memory_space<vmem>>, %arg4: memref<8x1xf32, #tpu.memory_space<vmem>>, %arg5: memref<8x1xf32, #tpu.memory_space<vmem>>, %arg6: memref<8x1xf32, #tpu.memory_space<vmem>>, %arg7: memref<8x1xf32, #tpu.memory_space<vmem>>) attributes {dimension_semantics = [#tpu.dimension_semantics<parallel>, #tpu.dimension_semantics<arbitrary>], iteration_bounds = array<i64: 3, 3>, scalar_prefetch = 0 : i64, scratch_operands = 3 : i64, tpu.core_type = #tpu.core_type<tc>, window_params = [{transform_indices = @transform_0, window_bounds = array<i64: 8, 128>}, {transform_indices = @transform_1, window_bounds = array<i64: 8, 1>}, {transform_indices = @transform_2, window_bounds = array<i64: 8, 1>}]} {
    %c0_i32 = arith.constant 0 : i32
    %0 = arith.cmpi eq, %arg1, %c0_i32 : i32
    %1 = arith.extui %0 : i1 to i32
    %c0_i32_0 = arith.constant 0 : i32
    %2 = arith.cmpi ne, %1, %c0_i32_0 : i32
    scf.if %2 {
      %cst = arith.constant 0xFF800000 : f32
      %18 = vector.broadcast %cst : f32 to vector<8x1xf32>
      %c0_9 = arith.constant 0 : index
      %c0_10 = arith.constant 0 : index
      %19 = vector.load %arg5[%c0_9, %c0_10] : memref<8x1xf32, #tpu.memory_space<vmem>>, vector<8x1xf32>
      tpu.vector_store %arg5[%c0_9, %c0_10], %18 {strides = array<i32>} : memref<8x1xf32, #tpu.memory_space<vmem>>, vector<8x1xf32>,
      %cst_11 = arith.constant 0.000000e+00 : f32
      %20 = vector.broadcast %cst_11 : f32 to vector<8x1xf32>
      %c0_12 = arith.constant 0 : index
      %c0_13 = arith.constant 0 : index
      %21 = vector.load %arg6[%c0_12, %c0_13] : memref<8x1xf32, #tpu.memory_space<vmem>>, vector<8x1xf32>
      tpu.vector_store %arg6[%c0_12, %c0_13], %20 {strides = array<i32>} : memref<8x1xf32, #tpu.memory_space<vmem>>, vector<8x1xf32>,
      %cst_14 = arith.constant 0.000000e+00 : f32
      %22 = vector.broadcast %cst_14 : f32 to vector<8x1xf32>
      %c0_15 = arith.constant 0 : index
      %c0_16 = arith.constant 0 : index
      %23 = vector.load %arg7[%c0_15, %c0_16] : memref<8x1xf32, #tpu.memory_space<vmem>>, vector<8x1xf32>
      tpu.vector_store %arg7[%c0_15, %c0_16], %22 {strides = array<i32>} : memref<8x1xf32, #tpu.memory_space<vmem>>, vector<8x1xf32>,
    } else {
    }
    %c0 = arith.constant 0 : index
    %c0_1 = arith.constant 0 : index
    %3 = vector.load %arg2[%c0, %c0_1] : memref<8x128xf32, #tpu.memory_space<vmem>>, vector<8x128xf32>
    %4 = tpu.iota {dimensions = array<i32: 1>} : vector<8x128xi32>
    %c0_2 = arith.constant 0 : index
    %c0_3 = arith.constant 0 : index
    %5 = vector.load %arg3[%c0_2, %c0_3] : memref<8x1xi32, #tpu.memory_space<vmem>>, vector<8x1xi32>
    %c128_i32 = arith.constant 128 : i32
    %6 = arith.muli %arg1, %c128_i32 : i32
    %7 = vector.broadcast %6 : i32 to vector<8x1xi32>
    %8 = arith.subi %5, %7 : vector<8x1xi32>
    %c2_i32 = arith.constant 2 : i32
    %9 = arith.cmpi eq, %arg1, %c2_i32 : i32
    %10 = arith.extui %9 : i1 to i32
    %c0_i32_4 = arith.constant 0 : i32
    %11 = arith.cmpi ne, %10, %c0_i32_4 : i32
    scf.if %11 {
      %c128_i32_9 = arith.constant 128 : i32
      %18 = arith.muli %arg1, %c128_i32_9 : i32
      %c320_i32 = arith.constant 320 : i32
      %19 = arith.subi %c320_i32, %18 : i32
      %20 = vector.broadcast %19 : i32 to vector<8x128xi32>
      %21 = arith.cmpi slt, %4, %20 : vector<8x128xi32>
      %cst = arith.constant 0xFF800000 : f32
      %22 = vector.broadcast %cst : f32 to vector<8x128xf32>
      %23 = arith.select %21, %3, %22 : vector<8x128xi1>, vector<8x128xf32>
      %c0_10 = arith.constant 0 : index
      %c0_11 = arith.constant 0 : index
      %24 = vector.load %arg5[%c0_10, %c0_11] : memref<8x1xf32, #tpu.memory_space<vmem>>, vector<8x1xf32>
      %cst_12 = arith.constant dense<0xFF800000> : vector<8xf32>
      %25 = vector.multi_reduction <maximumf>, %23, %cst_12 [1] : vector<8x128xf32> to vector<8xf32>
      %26 = vector.shape_cast %25 : vector<8xf32> to vector<8x1xf32>
      %27 = arith.maximumf %24, %26 : vector<8x1xf32>
      %28 = arith.subf %24, %27 : vector<8x1xf32>
      %29 = math.exp %28 : vector<8x1xf32>
      %30 = vector.broadcast %27 : vector<8x1xf32> to vector<8x128xf32>
      %31 = arith.subf %23, %30 : vector<8x128xf32>
      %32 = math.exp %31 : vector<8x128xf32>
      %c0_13 = arith.constant 0 : index
      %c0_14 = arith.constant 0 : index
      %33 = vector.load %arg6[%c0_13, %c0_14] : memref<8x1xf32, #tpu.memory_space<vmem>>, vector<8x1xf32>
      %34 = arith.mulf %29, %33 : vector<8x1xf32>
      %cst_15 = arith.constant dense<0.000000e+00> : vector<8xf32>
      %35 = vector.multi_reduction <add>, %32, %cst_15 [1] : vector<8x128xf32> to vector<8xf32>
      %36 = vector.shape_cast %35 : vector<8xf32> to vector<8x1xf32>
      %37 = arith.addf %34, %36 : vector<8x1xf32>
      %c0_16 = arith.constant 0 : index
      %c0_17 = arith.constant 0 : index
      %38 = vector.load %arg6[%c0_16, %c0_17] : memref<8x1xf32, #tpu.memory_space<vmem>>, vector<8x1xf32>
      tpu.vector_store %arg6[%c0_16, %c0_17], %37 {strides = array<i32>} : memref<8x1xf32, #tpu.memory_space<vmem>>, vector<8x1xf32>,
      %c0_18 = arith.constant 0 : index
      %c0_19 = arith.constant 0 : index
      %39 = vector.load %arg5[%c0_18, %c0_19] : memref<8x1xf32, #tpu.memory_space<vmem>>, vector<8x1xf32>
      tpu.vector_store %arg5[%c0_18, %c0_19], %27 {strides = array<i32>} : memref<8x1xf32, #tpu.memory_space<vmem>>, vector<8x1xf32>,
      %40 = vector.broadcast %8 : vector<8x1xi32> to vector<8x128xi32>
      %41 = arith.cmpi eq, %4, %40 : vector<8x128xi32>
      %c0_20 = arith.constant 0 : index
      %c0_21 = arith.constant 0 : index
      %42 = vector.load %arg7[%c0_20, %c0_21] : memref<8x1xf32, #tpu.memory_space<vmem>>, vector<8x1xf32>
      %cst_22 = arith.constant 0.000000e+00 : f32
      %43 = vector.broadcast %cst_22 : f32 to vector<8x128xf32>
      %44 = arith.select %41, %23, %43 : vector<8x128xi1>, vector<8x128xf32>
      %cst_23 = arith.constant dense<0.000000e+00> : vector<8xf32>
      %45 = vector.multi_reduction <add>, %44, %cst_23 [1] : vector<8x128xf32> to vector<8xf32>
      %46 = vector.shape_cast %45 : vector<8xf32> to vector<8x1xf32>
      %47 = arith.addf %42, %46 : vector<8x1xf32>
      %c0_24 = arith.constant 0 : index
      %c0_25 = arith.constant 0 : index
      %48 = vector.load %arg7[%c0_24, %c0_25] : memref<8x1xf32, #tpu.memory_space<vmem>>, vector<8x1xf32>
      tpu.vector_store %arg7[%c0_24, %c0_25], %47 {strides = array<i32>} : memref<8x1xf32, #tpu.memory_space<vmem>>, vector<8x1xf32>,
    } else {
    }
    %c2_i32_5 = arith.constant 2 : i32
    %12 = arith.cmpi ne, %arg1, %c2_i32_5 : i32
    %13 = arith.extui %12 : i1 to i32
    %c0_i32_6 = arith.constant 0 : i32
    %14 = arith.cmpi ne, %13, %c0_i32_6 : i32
    scf.if %14 {
      %c0_9 = arith.constant 0 : index
      %c0_10 = arith.constant 0 : index
      %18 = vector.load %arg5[%c0_9, %c0_10] : memref<8x1xf32, #tpu.memory_space<vmem>>, vector<8x1xf32>
      %cst = arith.constant dense<0xFF800000> : vector<8xf32>
      %19 = vector.multi_reduction <maximumf>, %3, %cst [1] : vector<8x128xf32> to vector<8xf32>
      %20 = vector.shape_cast %19 : vector<8xf32> to vector<8x1xf32>
      %21 = arith.maximumf %18, %20 : vector<8x1xf32>
      %22 = arith.subf %18, %21 : vector<8x1xf32>
      %23 = math.exp %22 : vector<8x1xf32>
      %24 = vector.broadcast %21 : vector<8x1xf32> to vector<8x128xf32>
      %25 = arith.subf %3, %24 : vector<8x128xf32>
      %26 = math.exp %25 : vector<8x128xf32>
      %c0_11 = arith.constant 0 : index
      %c0_12 = arith.constant 0 : index
      %27 = vector.load %arg6[%c0_11, %c0_12] : memref<8x1xf32, #tpu.memory_space<vmem>>, vector<8x1xf32>
      %28 = arith.mulf %23, %27 : vector<8x1xf32>
      %cst_13 = arith.constant dense<0.000000e+00> : vector<8xf32>
      %29 = vector.multi_reduction <add>, %26, %cst_13 [1] : vector<8x128xf32> to vector<8xf32>
      %30 = vector.shape_cast %29 : vector<8xf32> to vector<8x1xf32>
      %31 = arith.addf %28, %30 : vector<8x1xf32>
      %c0_14 = arith.constant 0 : index
      %c0_15 = arith.constant 0 : index
      %32 = vector.load %arg6[%c0_14, %c0_15] : memref<8x1xf32, #tpu.memory_space<vmem>>, vector<8x1xf32>
      tpu.vector_store %arg6[%c0_14, %c0_15], %31 {strides = array<i32>} : memref<8x1xf32, #tpu.memory_space<vmem>>, vector<8x1xf32>,
      %c0_16 = arith.constant 0 : index
      %c0_17 = arith.constant 0 : index
      %33 = vector.load %arg5[%c0_16, %c0_17] : memref<8x1xf32, #tpu.memory_space<vmem>>, vector<8x1xf32>
      tpu.vector_store %arg5[%c0_16, %c0_17], %21 {strides = array<i32>} : memref<8x1xf32, #tpu.memory_space<vmem>>, vector<8x1xf32>,
      %34 = vector.broadcast %8 : vector<8x1xi32> to vector<8x128xi32>
      %35 = arith.cmpi eq, %4, %34 : vector<8x128xi32>
      %c0_18 = arith.constant 0 : index
      %c0_19 = arith.constant 0 : index
      %36 = vector.load %arg7[%c0_18, %c0_19] : memref<8x1xf32, #tpu.memory_space<vmem>>, vector<8x1xf32>
      %cst_20 = arith.constant 0.000000e+00 : f32
      %37 = vector.broadcast %cst_20 : f32 to vector<8x128xf32>
      %38 = arith.select %35, %3, %37 : vector<8x128xi1>, vector<8x128xf32>
      %cst_21 = arith.constant dense<0.000000e+00> : vector<8xf32>
      %39 = vector.multi_reduction <add>, %38, %cst_21 [1] : vector<8x128xf32> to vector<8xf32>
      %40 = vector.shape_cast %39 : vector<8xf32> to vector<8x1xf32>
      %41 = arith.addf %36, %40 : vector<8x1xf32>
      %c0_22 = arith.constant 0 : index
      %c0_23 = arith.constant 0 : index
      %42 = vector.load %arg7[%c0_22, %c0_23] : memref<8x1xf32, #tpu.memory_space<vmem>>, vector<8x1xf32>
      tpu.vector_store %arg7[%c0_22, %c0_23], %41 {strides = array<i32>} : memref<8x1xf32, #tpu.memory_space<vmem>>, vector<8x1xf32>,
    } else {
    }
    %c2_i32_7 = arith.constant 2 : i32
    %15 = arith.cmpi eq, %arg1, %c2_i32_7 : i32
    %16 = arith.extui %15 : i1 to i32
    %c0_i32_8 = arith.constant 0 : i32
    %17 = arith.cmpi ne, %16, %c0_i32_8 : i32
    scf.if %17 {
      %c0_9 = arith.constant 0 : index
      %c0_10 = arith.constant 0 : index
      %18 = vector.load %arg5[%c0_9, %c0_10] : memref<8x1xf32, #tpu.memory_space<vmem>>, vector<8x1xf32>
      %c0_11 = arith.constant 0 : index
      %c0_12 = arith.constant 0 : index
      %19 = vector.load %arg6[%c0_11, %c0_12] : memref<8x1xf32, #tpu.memory_space<vmem>>, vector<8x1xf32>
      %20 = math.log %19 : vector<8x1xf32>
      %21 = arith.addf %18, %20 : vector<8x1xf32>
      %c0_13 = arith.constant 0 : index
      %c0_14 = arith.constant 0 : index
      %22 = vector.load %arg7[%c0_13, %c0_14] : memref<8x1xf32, #tpu.memory_space<vmem>>, vector<8x1xf32>
      %23 = arith.subf %21, %22 : vector<8x1xf32>
      %c0_15 = arith.constant 0 : index
      %c0_16 = arith.constant 0 : index
      %24 = vector.load %arg4[%c0_15, %c0_16] : memref<8x1xf32, #tpu.memory_space<vmem>>, vector<8x1xf32>
      tpu.vector_store %arg4[%c0_15, %c0_16], %23 {strides = array<i32>} : memref<8x1xf32, #tpu.memory_space<vmem>>, vector<8x1xf32>,
    } else {
    }
    return
  }
  func.func @transform_0(%arg0: i32, %arg1: i32) -> (i32, i32) {
    %c0_i32 = arith.constant 0 : i32
    return %arg0, %arg1 : i32, i32
  }
  func.func @transform_1(%arg0: i32, %arg1: i32) -> (i32, i32) {
    %c0_i32 = arith.constant 0 : i32
    %c0_i32_0 = arith.constant 0 : i32
    return %arg0, %c0_i32 : i32, i32
  }
  func.func @transform_2(%arg0: i32, %arg1: i32) -> (i32, i32) {
    %c0_i32 = arith.constant 0 : i32
    %c0_i32_0 = arith.constant 0 : i32
    return %arg0, %c0_i32 : i32, i32
  }
}

</mosaic_0001>

<llo_original>
// kernel: tpu_custom_call.1
$region0: #{tpu_custom_call.1}
  #allocation0 [shape = 'u32[]', space=smem, size = 0x4, offset = 0x4, fixed_abs, tag = 'smem constant byte address 0x4 - core index']
  #allocation1 [shape = 'u32[144,128]{1,0:T(1,128)}', space=vmem, size = 0x12000, scoped, tag = 'internal scratch']
  #allocation2 [shape = 'f32[8,1]{1,0:T(8,128)}', space=vmem, size = 0x1000, scoped, tag = 'scratch operand']
  #allocation3 [shape = 'f32[8,1]{1,0:T(8,128)}', space=vmem, size = 0x1000, scoped, tag = 'scratch operand']
  #allocation4 [shape = 'f32[8,1]{1,0:T(8,128)}', space=vmem, size = 0x1000, scoped, tag = 'scratch operand']
  %s0 = inlined_call_operand.hbm [shape: f32[20,320], index: 0, kind: input, shape index: {}]
  %s1 = inlined_call_operand.vmem [shape: s32[20,1], index: 1, kind: input, shape index: {}]
  %s2 = inlined_call_operand.vmem [shape: f32[20,1], index: 2, kind: output, shape index: {}]
  %s3 = sld [smem:[#allocation0]]
  $region61: #{tpu_custom_call.1} parent=0
    _
  %s5 = ssub.s32 1, %s3
  %s6 = scalar_select 0, %s5, %s3
  $region1: #{tpu_custom_call.1} parent=0
    #allocation5 [shape = 'u8[8192]{0}', space=vmem, size = 0x2000, scoped, tag = 'input window, operand 0']
    #allocation6 [shape = 's32[2]{0}', space=sflag, size = 0x8, scoped, tag = 'scoped memory for tpu_custom_call.1']
    %7 = vsyncpa [#allocation6], 0
    %s8 = scalar_lea.sflag [#allocation6], 1
    %9 = vsyncpa %s8, 0
    loop: start=0, step=1, limit=11
    $region2: #{tpu_custom_call.1} parent=1 // loop_pre_header
      _
    $region3: #{tpu_custom_call.1} parent=1 // loop_header
      %s11 = sphi 0, %s15
      %p12 = scmp.ge.s32.totalorder %s11, 11
      %s18 = sphi 0, %s30
      %s19 = sphi 0, %s26
      %s20 = sphi 0, %s18
      %s21 = sphi 0, %s19
      %s22 = sphi 0, %s20
      %s23 = sphi 0, %s21
      %s35 = sphi 0, %s37
      %s38 = sphi 0, %s35
      %s39 = sphi 0, %s38
      %s55 = sphi 0, %s39
      %s61 = sphi 0, %s63
      %s64 = sphi 0, %s61
      %s65 = sphi 0, %s64
      %s81 = sphi 0, %s65
      %s87 = sphi 0, %s89
      %s90 = sphi 0, %s87
      %s91 = sphi 0, %s90
      %s107 = sphi 0, %s91
    $region4: #{tpu_custom_call.1} parent=1 // loop_header_branch
      %14 = sbr.rel (%p12) target = $region8
    $region5: #{tpu_custom_call.1} parent=1 // loop_body
      %s16 = ssub.s32 %s11, 1
      %s17 = ssub.s32 %s11, 2
      %s24 = sadd.s32 1, %s19
      %p25 = scmp.ge.s32.totalorder %s24, 3
      %s26 = scalar_select %p25, 0, %s24
      %s27 = sadd.s32 1, %s18
      %s28 = scalar_select %p25, %s27, %s18
      %p29 = scmp.ge.s32.totalorder %s28, 3
      %s30 = scalar_select %p29, 0, %s28
      %s31 = ssub.s32 %s18, %s30
      %s32 = ssub.s32 %s19, %s26
      %s33 = sor.u32 %s31, %s32
      %p34 = scmp.eq.s32.totalorder %s33, 0
      %s36 = sadd.s32 %s35, 1
      %s37 = scalar_select %p34, %s35, %s36
      %p40 = pneg %p34
      %p41 = scmp.eq.s32.totalorder %s11, 8
      %p42 = por %p40, %p41
      %p43 = scmp.ne.s32.totalorder %s35, %s38
      %p44 = scmp.eq.s32.totalorder %s11, 0
      %p45 = por %p43, %p44
      %p46 = scmp.ne.s32.totalorder %s35, %s38
      %p47 = scmp.eq.s32.totalorder %s16, 8
      %p48 = por %p46, %p47
      %p49 = scmp.ne.s32.totalorder %s38, %s39
      %p50 = scmp.eq.s32.totalorder %s16, 0
      %p51 = por %p49, %p50
      %p52 = scmp.ne.s32.totalorder %s38, %s39
      %p53 = scmp.eq.s32.totalorder %s17, 8
      %p54 = por %p52, %p53
      %p56 = scmp.ne.s32.totalorder %s39, %s55
      %p57 = scmp.eq.s32.totalorder %s17, 0
      %p58 = por %p56, %p57
      %s59 = ssub.s32 %s18, %s30
      %p60 = scmp.eq.s32.totalorder %s59, 0
      %s62 = sadd.s32 %s61, 1
      %s63 = scalar_select %p60, %s61, %s62
      %p66 = pneg %p60
      %p67 = scmp.eq.s32.totalorder %s11, 8
      %p68 = por %p66, %p67
      %p69 = scmp.ne.s32.totalorder %s61, %s64
      %p70 = scmp.eq.s32.totalorder %s11, 0
      %p71 = por %p69, %p70
      %p72 = scmp.ne.s32.totalorder %s61, %s64
      %p73 = scmp.eq.s32.totalorder %s16, 8
      %p74 = por %p72, %p73
      %p75 = scmp.ne.s32.totalorder %s64, %s65
      %p76 = scmp.eq.s32.totalorder %s16, 0
      %p77 = por %p75, %p76
      %p78 = scmp.ne.s32.totalorder %s64, %s65
      %p79 = scmp.eq.s32.totalorder %s17, 8
      %p80 = por %p78, %p79
      %p82 = scmp.ne.s32.totalorder %s65, %s81
      %p83 = scmp.eq.s32.totalorder %s17, 0
      %p84 = por %p82, %p83
      %s85 = ssub.s32 %s18, %s30
      %p86 = scmp.eq.s32.totalorder %s85, 0
      %s88 = sadd.s32 %s87, 1
      %s89 = scalar_select %p86, %s87, %s88
      %p92 = pneg %p86
      %p93 = scmp.eq.s32.totalorder %s11, 8
      %p94 = por %p92, %p93
      %p95 = scmp.ne.s32.totalorder %s87, %s90
      %p96 = scmp.eq.s32.totalorder %s11, 0
      %p97 = por %p95, %p96
      %p98 = scmp.ne.s32.totalorder %s87, %s90
      %p99 = scmp.eq.s32.totalorder %s16, 8
      %p100 = por %p98, %p99
      %p101 = scmp.ne.s32.totalorder %s90, %s91
      %p102 = scmp.eq.s32.totalorder %s16, 0
      %p103 = por %p101, %p102
      %p104 = scmp.ne.s32.totalorder %s90, %s91
      %p105 = scmp.eq.s32.totalorder %s17, 8
      %p106 = por %p104, %p105
      %p108 = scmp.ne.s32.totalorder %s91, %s107
      %p109 = scmp.eq.s32.totalorder %s17, 0
      %p110 = por %p108, %p109
      %p111 = scmp.le.s32.totalorder 1, %s11
      %p112 = scmp.lt.s32.totalorder %s11, 10
      %p113 = pnand %p111, %p112
      %p114 = pneg %p113
      // Predicated region
      $region9: #{tpu_custom_call.1} parent=5 // pred_check
        _
      $region10: #{tpu_custom_call.1} parent=5 // pred_check_branch
        %116 = sbr.rel (%p113) target = $region12
      $region11: #{tpu_custom_call.1} parent=5 // pred_region
        %s117 = ssub.s32 %s11, 1
      $region12: #{tpu_custom_call.1} parent=5 // pred_fallthru
        _
      %p118 = scmp.lt.s32.totalorder %s11, 9
      // Predicated region
      $region13: #{tpu_custom_call.1} parent=5 // pred_check
        %p119 = pneg %p118
      $region14: #{tpu_custom_call.1} parent=5 // pred_check_branch
        %121 = sbr.rel (%p119) target = $region16
      $region15: #{tpu_custom_call.1} parent=5 // pred_region
        // Predicated region
        $region17: #{tpu_custom_call.1} parent=15 // pred_check
          %p122 = pneg %p45
        $region18: #{tpu_custom_call.1} parent=15 // pred_check_branch
          %124 = sbr.rel (%p122) target = $region20
        $region19: #{tpu_custom_call.1} parent=15 // pred_region
          %s125 = sand.u32 %s35, 1
          %s126 = scalar_lea.sflag [#allocation6], %s125
          %s127 = sand.u32 %s35, 1
          %s128 = smul.addr %s127, 8
          %s129 = scalar_lea.vmem [#allocation5], %s128
          %s131 = ssub.s32 128, 128
          %132 = vsyncadd %s126, %s131
          %s133 = smul.addr %s18, 3
          %s134 = sadd.s32 %s19, %s133
          %s135 = smul.addr %s134, 128
          %s136 = scalar_lea.hbm %s0, %s135
          %s138 = sshll.u32 %s129, 4
          %s139 = int_to_ptr.vmem [resolvable:$true] %s138
          %141 = dma.hbm_to_vmem [thread:$0]  %s136, 128, %s139, %s126
        $region20: #{tpu_custom_call.1} parent=15 // pred_fallthru
          _
        // Predicated region
        $region21: #{tpu_custom_call.1} parent=15 // pred_check
          %p142 = pneg %p71
        $region22: #{tpu_custom_call.1} parent=15 // pred_check_branch
          %144 = sbr.rel (%p142) target = $region24
        $region23: #{tpu_custom_call.1} parent=15 // pred_region
          %p145 = scmp.lt.s32.totalorder %s18, 2
          %s146 = scalar_select %p145, %s18, 2
          %s147 = smul.addr %s146, 8
          %s148 = scalar_lea.vmem %s1, %s147
        $region24: #{tpu_custom_call.1} parent=15 // pred_fallthru
          _
      $region16: #{tpu_custom_call.1} parent=5 // pred_fallthru
        _
      %p149 = scmp.le.s32.totalorder 1, %s11
      %p150 = scmp.lt.s32.totalorder %s11, 10
      %p151 = pnand %p149, %p150
      %p152 = pneg %p151
      // Predicated region
      $region25: #{tpu_custom_call.1} parent=5 // pred_check
        _
      $region26: #{tpu_custom_call.1} parent=5 // pred_check_branch
        %154 = sbr.rel (%p151) target = $region28
      $region27: #{tpu_custom_call.1} parent=5 // pred_region
        %s155 = ssub.s32 %s11, 1
        %s156 = sand.u32 %s38, 1
        %s157 = scalar_lea.sflag [#allocation6], %s156
        %s158 = sand.u32 %s38, 1
        %s159 = smul.addr %s158, 8
        %s160 = scalar_lea.vmem [#allocation5], %s159
        // Predicated region
        $region29: #{tpu_custom_call.1} parent=27 // pred_check
          %p161 = pneg %p51
        $region30: #{tpu_custom_call.1} parent=27 // pred_check_branch
          %163 = sbr.rel (%p161) target = $region32
        $region31: #{tpu_custom_call.1} parent=27 // pred_region
          %164 = dma.done %s157, 128
        $region32: #{tpu_custom_call.1} parent=27 // pred_fallthru
          _
        %s165 = sand.u32 %s38, 1
        %s166 = scalar_lea.sflag [#allocation6], %s165
        %s167 = sand.u32 %s38, 1
        %s168 = smul.addr %s167, 8
        %s169 = scalar_lea.vmem [#allocation5], %s168
        %p170 = pneg %p51
        %p171 = pneg %p48
        %p172 = scmp.lt.s32.totalorder %s20, 2
        %s173 = scalar_select %p172, %s20, 2
        %s174 = smul.addr %s173, 8
        %s175 = scalar_lea.vmem %s1, %s174
        %p176 = pneg %p77
        %p177 = pneg %p74
        %p178 = pneg %p103
        %p179 = pneg %p100
        %p180 = scmp.lt.s32.totalorder %s20, 2
        %s181 = scalar_select %p180, %s20, 2
        %s182 = smul.addr %s181, 8
        %s183 = scalar_lea.vmem %s2, %s182
        %p184 = scmp.lt.s32.totalorder %s20, 2
        %s185 = scalar_select %p184, %s20, 2
        %s186 = smul.addr %s185, 8
        %s187 = scalar_lea.vmem %s1, %s186
        %p188 = scmp.lt.s32.totalorder %s20, 2
        %s189 = scalar_select %p188, %s20, 2
        %s190 = smul.addr %s189, 8
        %s191 = scalar_lea.vmem %s2, %s190
        %p192 = scmp.eq.s32.totalorder %s21, 0
        // Predicated region
        $region33: #{tpu_custom_call.1} parent=27 // pred_check
          %p193 = pneg %p192
        $region34: #{tpu_custom_call.1} parent=27 // pred_check_branch
          %195 = sbr.rel (%p193) target = $region36
        $region35: #{tpu_custom_call.1} parent=27 // pred_region
          %vm196 = vcmask 7168
          %197 = vst.msk [vmem:[#allocation2] sm:$0xff] %vm196, -inf
          %198 = vst.msk [vmem:[#allocation3] sm:$0xff] %vm196, 0.0
          %199 = vst.msk [vmem:[#allocation4] sm:$0xff] %vm196, 0.0
        $region36: #{tpu_custom_call.1} parent=27 // pred_fallthru
          _
        %v200 = vld [vmem:[%s160] sm:$0xff]
        %v201 = vlaneseq
        %v202 = vand.u32 %v201, 127
        %v203 = vld [vmem:[%s187] sm:$0xff]
        %s204 = smul.u32 %s21, 128
        %v205 = vstv %s204
        %v206 = vsub.s32 %v203, %v205
        %p207 = scmp.eq.s32.totalorder %s21, 2
        // Predicated region
        $region37: #{tpu_custom_call.1} parent=27 // pred_check
          %p208 = pneg %p207
        $region38: #{tpu_custom_call.1} parent=27 // pred_check_branch
          %210 = sbr.rel (%p208) target = $region40
        $region39: #{tpu_custom_call.1} parent=27 // pred_region
          %s211 = ssub.s32 320, %s204
          %v212 = vstv %s211
          %vm213 = vcmp.lt.s32.totalorder %v202, %v212
          %v214 = vsel %vm213, %v200, -inf
          %v215 = vld [vmem:[#allocation2] sm:$0xff]
          %216 = vmax.xlane.f32.xlu0 %v214
          %v217 = vpop.xlane.xlu0 %216
          %v218 = vmax.f32 %v215, %v217
          %v219 = vsub.f32 %v215, %v218
          %v220 = vmul.f32 %v219, 1.442695
          %v221 = vpow.pop %v220
          %223 = vset.pattern.permute.xlu0 0
          %224 = vperm.xlu0 %223, %v218
          %v225 = vpop.permute.xlu0 %224
          %v227 = vsub.f32 %v214, %v225
          %v228 = vmul.f32 %v227, 1.442695
          %v229 = vpow.pop %v228
          %v230 = vld [vmem:[#allocation3] sm:$0xff]
          %v231 = vmul.f32 %v221, %v230
          %232 = vadd.xlane.f32.xlu0 %v229
          %v233 = vpop.xlane.xlu0 %232
          %v234 = vadd.f32 %v231, %v233
          %vm235 = vcmask 7168
          %236 = vst.msk [vmem:[#allocation3] sm:$0xff] %vm235, %v234
          %237 = vst.msk [vmem:[#allocation2] sm:$0xff] %vm235, %v218
          %238 = vset.pattern.permute.xlu0 0
          %239 = vperm.xlu0 %238, %v206
          %v240 = vpop.permute.xlu0 %239
          %vm241 = vcmp.eq.s32.totalorder %v202, %v240
          %v242 = vld [vmem:[#allocation4] sm:$0xff]
          %v243 = vsel %vm241, %v214, 0.0
          %244 = vadd.xlane.f32.xlu0 %v243
          %v245 = vpop.xlane.xlu0 %244
          %v246 = vadd.f32 %v242, %v245
          %247 = vst.msk [vmem:[#allocation4] sm:$0xff] %vm235, %v246
        $region40: #{tpu_custom_call.1} parent=27 // pred_fallthru
          _
        %p248 = scmp.ne.s32.totalorder %s21, 2
        // Predicated region
        $region41: #{tpu_custom_call.1} parent=27 // pred_check
          %p249 = pneg %p248
        $region42: #{tpu_custom_call.1} parent=27 // pred_check_branch
          %251 = sbr.rel (%p249) target = $region44
        $region43: #{tpu_custom_call.1} parent=27 // pred_region
          %v252 = vld [vmem:[#allocation2] sm:$0xff]
          %253 = vmax.xlane.f32.xlu0 %v200
          %v254 = vpop.xlane.xlu0 %253
          %v255 = vmax.f32 %v252, %v254
          %v256 = vsub.f32 %v252, %v255
          %v257 = vmul.f32 %v256, 1.442695
          %v258 = vpow.pop %v257
          %260 = vset.pattern.permute.xlu0 0
          %261 = vperm.xlu0 %260, %v255
          %v262 = vpop.permute.xlu0 %261
          %v264 = vsub.f32 %v200, %v262
          %v265 = vmul.f32 %v264, 1.442695
          %v266 = vpow.pop %v265
          %v267 = vld [vmem:[#allocation3] sm:$0xff]
          %v268 = vmul.f32 %v258, %v267
          %269 = vadd.xlane.f32.xlu0 %v266
          %v270 = vpop.xlane.xlu0 %269
          %v271 = vadd.f32 %v268, %v270
          %vm272 = vcmask 7168
          %273 = vst.msk [vmem:[#allocation3] sm:$0xff] %vm272, %v271
          %274 = vst.msk [vmem:[#allocation2] sm:$0xff] %vm272, %v255
          %275 = vset.pattern.permute.xlu0 0
          %276 = vperm.xlu0 %275, %v206
          %v277 = vpop.permute.xlu0 %276
          %vm278 = vcmp.eq.s32.totalorder %v202, %v277
          %v279 = vld [vmem:[#allocation4] sm:$0xff]
          %v280 = vsel %vm278, %v200, 0.0
          %281 = vadd.xlane.f32.xlu0 %v280
          %v282 = vpop.xlane.xlu0 %281
          %v283 = vadd.f32 %v279, %v282
          %284 = vst.msk [vmem:[#allocation4] sm:$0xff] %vm272, %v283
        $region44: #{tpu_custom_call.1} parent=27 // pred_fallthru
          _
        // Predicated region
        $region45: #{tpu_custom_call.1} parent=27 // pred_check
          %p285 = pneg %p207
        $region46: #{tpu_custom_call.1} parent=27 // pred_check_branch
          %287 = sbr.rel (%p285) target = $region48
        $region47: #{tpu_custom_call.1} parent=27 // pred_region
          %v288 = vld [vmem:[#allocation2] sm:$0xff]
          %v289 = vld [vmem:[#allocation3] sm:$0xff]
          %v290 = vlog2.pop %v289
          %v291 = vmul.f32 %v290, 0.6931472
          %v292 = vadd.f32 %v288, %v291
          %v293 = vld [vmem:[#allocation4] sm:$0xff]
          %v294 = vsub.f32 %v292, %v293
          %vm295 = vcmask 7168
          %296 = vst.msk [vmem:[%s191] sm:$0xff] %vm295, %v294
        $region48: #{tpu_custom_call.1} parent=27 // pred_fallthru
          _
        %p297 = scmp.lt.s32.totalorder %s20, 2
        %s298 = scalar_select %p297, %s20, 2
        %s299 = smul.addr %s298, 8
        %s300 = scalar_lea.vmem %s2, %s299
        // Predicated region
        $region49: #{tpu_custom_call.1} parent=27 // pred_check
          %p301 = pneg %p100
        $region50: #{tpu_custom_call.1} parent=27 // pred_check_branch
          %303 = sbr.rel (%p301) target = $region52
        $region51: #{tpu_custom_call.1} parent=27 // pred_region
          _
        $region52: #{tpu_custom_call.1} parent=27 // pred_fallthru
          _
      $region28: #{tpu_custom_call.1} parent=5 // pred_fallthru
        _
      %p304 = scmp.le.s32.totalorder 2, %s11
      // Predicated region
      $region53: #{tpu_custom_call.1} parent=5 // pred_check
        %p305 = pneg %p304
      $region54: #{tpu_custom_call.1} parent=5 // pred_check_branch
        %307 = sbr.rel (%p305) target = $region56
      $region55: #{tpu_custom_call.1} parent=5 // pred_region
        %s308 = ssub.s32 %s11, 2
        // Predicated region
        $region57: #{tpu_custom_call.1} parent=55 // pred_check
          %p309 = pneg %p106
        $region58: #{tpu_custom_call.1} parent=55 // pred_check_branch
          %311 = sbr.rel (%p309) target = $region60
        $region59: #{tpu_custom_call.1} parent=55 // pred_region
          %p312 = scmp.lt.s32.totalorder %s22, 2
          %s313 = scalar_select %p312, %s22, 2
          %s314 = smul.addr %s313, 8
          %s315 = scalar_lea.vmem %s2, %s314
        $region60: #{tpu_custom_call.1} parent=55 // pred_fallthru
          _
      $region56: #{tpu_custom_call.1} parent=5 // pred_fallthru
        _
    $region6: #{tpu_custom_call.1} parent=1 // loop_footer
      %s15 = sadd.s32 1, %s11
    $region7: #{tpu_custom_call.1} parent=1 // loop_footer_branch
      %10 = sbr.rel target = $region3
    $region8: #{tpu_custom_call.1} parent=1 // loop_exit
      _
    %316 = vsyncpa [#allocation6], 1
    %s317 = scalar_lea.sflag [#allocation6], 1
    %318 = vsyncpa %s317, 1

</llo_original>
